<compile_context>
chip_gen: v7x
topology: tpu7x:2x2x1
jax: 0.10.0
libtpu: 0.0.40
codegen_flags: <defaults>
</compile_context>

<pallas_src>
import jax
import jax.numpy as jnp
from jax.experimental import pallas as pl
from jax.experimental.pallas import tpu as pltpu


_INV_SQRT2 = 0.7071067811865476


def _mlp_kernel(x_ref, w1_ref, b1_ref, w2_ref, b2_ref, o_ref):
    # x_ref: (nb, Cin, tp); w1: (Cmid, Cin); b1: (Cmid, 1);
    # w2: (Cout, Cmid);     b2: (Cout, 1);  o_ref: (nb, Cout, tp)
    w1 = w1_ref[...]
    b1 = b1_ref[...]
    w2 = w2_ref[...]
    b2 = b2_ref[...]
    nb = x_ref.shape[0]
    # nb is a small static block size: a trace-time unrolled loop keeps each
    # per-row matmul a plain 2-D MXU op with pixels in the lane dimension.
    for b in range(nb):
        x = x_ref[b]                                               # (Cin, tp)
        h = jnp.dot(w1, x, preferred_element_type=jnp.float32) + b1
        # Exact GELU (PyTorch F.gelu default): 0.5 * h * (1 + erf(h / sqrt(2))).
        h = 0.5 * h * (1.0 + jax.lax.erf(h * _INV_SQRT2))
        y = jnp.dot(w2, h, preferred_element_type=jnp.float32) + b2
        o_ref[b] = y.astype(o_ref.dtype)


def _choose_tiles(N, P, Cin, Cmid, Cout, *,
                  block_budget_bytes=24 << 20,       # per-step VMEM for blocks
                  target_px_per_step=16384):
    """Pick (nb, tp): batch rows and pixel columns per grid step.

    VMEM bytes per pixel column per batch row in one step (f32):
      input  block, double-buffered : 2 * Cin  * 4
      output block, double-buffered : 2 * Cout * 4
      hidden intermediates (~2 live): 2 * Cmid * 4
    Weights are tiny relative to the budget and covered by the headroom left
    under vmem_limit_bytes.
    """
    per_px_row = 4 * (2 * Cin + 2 * Cout + 2 * Cmid)

    if P <= 128:
        tp = P                                   # full extent: legal BlockSpec
    else:
        tp_cap = max(128, (block_budget_bytes // per_px_row) // 128 * 128)
        tp = min((P // 128) * 128, tp_cap)       # lane-dense, cdiv handles rest
    gp = pl.cdiv(P, tp)

    # Batch blocking: amortize per-step overhead when the pixel axis is short,
    # but keep >=2 total grid steps (dual-TC occupancy on v7x) and stay within
    # the VMEM budget.  nb always divides N exactly (no partial batch blocks).
    nb = 1
    while True:
        cand = nb * 2
        if cand > N or N % cand != 0:
            break
        if (N // cand) * gp < 2:                 # would starve the second TC
            break
        if cand * tp * per_px_row > block_budget_bytes:
            break
        if nb * tp >= target_px_per_step:        # already enough work per step
            break
        nb = cand

    # If the whole problem collapsed to a single step but pixels can be split,
    # halve the pixel tile so both TensorCores get a block.
    if (N // nb) * gp < 2 and tp >= 256:
        tp = max(128, ((tp // 2) // 128) * 128)
        gp = pl.cdiv(P, tp)

    return nb, tp, gp


@jax.jit
def mlp_forward(x_nchw, w1, b1, w2, b2):
    """x_nchw: (N, Cin, H, W) f32.
    w1: (Cmid, Cin), b1: (Cmid, 1), w2: (Cout, Cmid), b2: (Cout, 1)
    (PyTorch Conv2d weight orientation, kernel dims squeezed).
    Returns (N, Cout, H, W)."""
    N, Cin, H, W = x_nchw.shape
    Cmid = w1.shape[0]
    Cout = w2.shape[0]
    P = H * W

    nb, tp, gp = _choose_tiles(N, P, Cin, Cmid, Cout)
    grid = (N // nb, gp)      # both axes independent -> "parallel"

    # (N, Cin, H, W) -> (N, Cin, H*W): contiguous-view reshape, no HBM pass.
    x_rows = x_nchw.reshape(N, Cin, P)

    cost = pl.CostEstimate(
        flops=2 * N * P * (Cin * Cmid + Cmid * Cout),
        transcendentals=N * P * Cmid,
        bytes_accessed=4 * (N * P * (Cin + Cout)
                            + Cin * Cmid + Cmid * Cout + Cmid + Cout),
    )

    out = pl.pallas_call(
        _mlp_kernel,
        out_shape=jax.ShapeDtypeStruct((N, Cout, P), x_nchw.dtype),
        grid_spec=pltpu.PrefetchScalarGridSpec(
            num_scalar_prefetch=0,
            grid=grid,
            in_specs=[
                pl.BlockSpec((nb, Cin, tp), lambda n, j: (n, 0, j)),
                pl.BlockSpec((Cmid, Cin), lambda n, j: (0, 0)),
                pl.BlockSpec((Cmid, 1), lambda n, j: (0, 0)),
                pl.BlockSpec((Cout, Cmid), lambda n, j: (0, 0)),
                pl.BlockSpec((Cout, 1), lambda n, j: (0, 0)),
            ],
            out_specs=pl.BlockSpec((nb, Cout, tp), lambda n, j: (n, 0, j)),
        ),
        compiler_params=pltpu.CompilerParams(
            dimension_semantics=("parallel", "parallel"),
            # Above the 16/32 MiB scoped defaults (v5e / v6e+v7x) so the large
            # double-buffered pixel tiles compile; under v7x's 64 MiB physical.
            vmem_limit_bytes=48 << 20,
        ),
        cost_estimate=cost,
    )(x_rows, w1, b1, w2, b2)

    # (N, Cout, H*W) -> (N, Cout, H, W): free reshape.
    return out.reshape(N, Cout, H, W)


def init_params(key, in_channels, mid_channels, out_channels):
    """Deterministic init mimicking Conv2d(k=1): weight (Cout, Cin), bias (Cout, 1).

    Weights are kept in the PyTorch Conv2d orientation (out, in) so the kernel
    can do W @ x_pixels directly with pixels in the lane dimension.
    """
    k1, k2, k3, k4 = jax.random.split(key, 4)
    bound1 = 1.0 / jnp.sqrt(in_channels)
    bound2 = 1.0 / jnp.sqrt(mid_channels)
    w1 = jax.random.uniform(k1, (mid_channels, in_channels), jnp.float32,
                            -bound1, bound1)
    b1 = jax.random.uniform(k2, (mid_channels, 1), jnp.float32, -bound1, bound1)
    w2 = jax.random.uniform(k3, (out_channels, mid_channels), jnp.float32,
                            -bound2, bound2)
    b2 = jax.random.uniform(k4, (out_channels, 1), jnp.float32, -bound2, bound2)
    return w1, b1, w2, b2


if __name__ == "__main__":
    key = jax.random.PRNGKey(0)
    k_x, k_p = jax.random.split(key)

    N, Cin, H, W = 2, 4, 16, 16
    Cmid, Cout = 32, 8

    x = jax.random.normal(k_x, (N, Cin, H, W), dtype=jnp.float32)
    w1, b1, w2, b2 = init_params(k_p, Cin, Cmid, Cout)

    out = mlp_forward(x, w1, b1, w2, b2)
    out = jax.block_until_ready(out)

    # Reference check in plain JAX (exact-erf GELU, same as F.gelu default).
    x_rows = jnp.transpose(x, (0, 2, 3, 1)).reshape(-1, Cin)   # (N*H*W, Cin)
    h = x_rows @ w1.T + b1[:, 0]
    h = 0.5 * h * (1.0 + jax.lax.erf(h / jnp.sqrt(2.0)))
    y = h @ w2.T + b2[:, 0]
    ref = jnp.transpose(y.reshape(N, H, W, Cout), (0, 3, 1, 2))

    assert out.shape == (N, Cout, H, W)
    assert jnp.allclose(out, ref, atol=1e-5, rtol=1e-5)

    print("KERNEL_OK")
</pallas_src>

<mosaic_0001>
module attributes {stable_mosaic.version = 11 : i64} {
  func.func @_mlp_kernel(%arg0: i32, %arg1: i32, %arg2: memref<1x4x256xf32, #tpu.memory_space<vmem>>, %arg3: memref<32x4xf32, #tpu.memory_space<vmem>>, %arg4: memref<32x1xf32, #tpu.memory_space<vmem>>, %arg5: memref<8x32xf32, #tpu.memory_space<vmem>>, %arg6: memref<8x1xf32, #tpu.memory_space<vmem>>, %arg7: memref<1x8x256xf32, #tpu.memory_space<vmem>>) attributes {dimension_semantics = [#tpu.dimension_semantics<parallel>, #tpu.dimension_semantics<parallel>], iteration_bounds = array<i64: 2, 1>, scalar_prefetch = 0 : i64, scratch_operands = 0 : i64, tpu.core_type = #tpu.core_type<tc>, window_params = [{transform_indices = @transform_0, window_bounds = array<i64: 1, 4, 256>}, {pipeline_mode = #tpu.pipeline_mode<synchronous>, transform_indices = @transform_1, window_bounds = array<i64: 32, 4>}, {pipeline_mode = #tpu.pipeline_mode<synchronous>, transform_indices = @transform_2, window_bounds = array<i64: 32, 1>}, {pipeline_mode = #tpu.pipeline_mode<synchronous>, transform_indices = @transform_3, window_bounds = array<i64: 8, 32>}, {pipeline_mode = #tpu.pipeline_mode<synchronous>, transform_indices = @transform_4, window_bounds = array<i64: 8, 1>}, {transform_indices = @transform_5, window_bounds = array<i64: 1, 8, 256>}]} {
    %c0 = arith.constant 0 : index
    %c0_0 = arith.constant 0 : index
    %0 = vector.load %arg3[%c0, %c0_0] : memref<32x4xf32, #tpu.memory_space<vmem>>, vector<32x4xf32>
    %c0_1 = arith.constant 0 : index
    %c0_2 = arith.constant 0 : index
    %1 = vector.load %arg4[%c0_1, %c0_2] : memref<32x1xf32, #tpu.memory_space<vmem>>, vector<32x1xf32>
    %c0_3 = arith.constant 0 : index
    %c0_4 = arith.constant 0 : index
    %2 = vector.load %arg5[%c0_3, %c0_4] : memref<8x32xf32, #tpu.memory_space<vmem>>, vector<8x32xf32>
    %c0_5 = arith.constant 0 : index
    %c0_6 = arith.constant 0 : index
    %3 = vector.load %arg6[%c0_5, %c0_6] : memref<8x1xf32, #tpu.memory_space<vmem>>, vector<8x1xf32>
    %c0_7 = arith.constant 0 : index
    %c0_8 = arith.constant 0 : index
    %c0_9 = arith.constant 0 : index
    %4 = vector.load %arg2[%c0_7, %c0_8, %c0_9] : memref<1x4x256xf32, #tpu.memory_space<vmem>>, vector<1x4x256xf32>
    %5 = vector.shape_cast %4 : vector<1x4x256xf32> to vector<4x256xf32>
    %cst = arith.constant dense<0.000000e+00> : vector<32x256xf32>
    %6 = tpu.matmul %0, %5, %cst {dimension_numbers = #tpu.dot_dimension_numbers<[1], [0], [0], [1], [0, 0, 1, 1], [], []>} : vector<32x4xf32>, vector<4x256xf32>, vector<32x256xf32> -> vector<32x256xf32>
    %7 = vector.broadcast %1 : vector<32x1xf32> to vector<32x256xf32>
    %8 = arith.addf %6, %7 : vector<32x256xf32>
    %cst_10 = arith.constant 5.000000e-01 : f32
    %9 = vector.broadcast %cst_10 : f32 to vector<32x256xf32>
    %10 = arith.mulf %9, %8 : vector<32x256xf32>
    %cst_11 = arith.constant 0.707106769 : f32
    %11 = vector.broadcast %cst_11 : f32 to vector<32x256xf32>
    %12 = arith.mulf %8, %11 : vector<32x256xf32>
    %13 = math.erf %12 : vector<32x256xf32>
    %cst_12 = arith.constant 1.000000e+00 : f32
    %14 = vector.broadcast %cst_12 : f32 to vector<32x256xf32>
    %15 = arith.addf %14, %13 : vector<32x256xf32>
    %16 = arith.mulf %10, %15 : vector<32x256xf32>
    %cst_13 = arith.constant dense<0.000000e+00> : vector<8x256xf32>
    %17 = tpu.matmul %2, %16, %cst_13 {dimension_numbers = #tpu.dot_dimension_numbers<[1], [0], [0], [1], [0, 0, 1, 1], [], []>} : vector<8x32xf32>, vector<32x256xf32>, vector<8x256xf32> -> vector<8x256xf32>
    %18 = vector.broadcast %3 : vector<8x1xf32> to vector<8x256xf32>
    %19 = arith.addf %17, %18 : vector<8x256xf32>
    %c0_14 = arith.constant 0 : index
    %c0_15 = arith.constant 0 : index
    %c0_16 = arith.constant 0 : index
    %20 = vector.load %arg7[%c0_14, %c0_15, %c0_16] : memref<1x8x256xf32, #tpu.memory_space<vmem>>, vector<1x8x256xf32>
    %21 = vector.shape_cast %20 : vector<1x8x256xf32> to vector<8x256xf32>
    %22 = vector.shape_cast %19 : vector<8x256xf32> to vector<1x8x256xf32>
    tpu.vector_store %arg7[%c0_14, %c0_15, %c0_16], %22 {strides = array<i32>} : memref<1x8x256xf32, #tpu.memory_space<vmem>>, vector<1x8x256xf32>,
    return
  }
  func.func @transform_0(%arg0: i32, %arg1: i32) -> (i32, i32, i32) {
    %c0_i32 = arith.constant 0 : i32
    %c0_i32_0 = arith.constant 0 : i32
    return %arg0, %c0_i32, %arg1 : i32, i32, i32
  }
  func.func @transform_1(%arg0: i32, %arg1: i32) -> (i32, i32) {
    %c0_i32 = arith.constant 0 : i32
    %c0_i32_0 = arith.constant 0 : i32
    %c0_i32_1 = arith.constant 0 : i32
    return %c0_i32, %c0_i32_0 : i32, i32
  }
  func.func @transform_2(%arg0: i32, %arg1: i32) -> (i32, i32) {
    %c0_i32 = arith.constant 0 : i32
    %c0_i32_0 = arith.constant 0 : i32
    %c0_i32_1 = arith.constant 0 : i32
    return %c0_i32, %c0_i32_0 : i32, i32
  }
  func.func @transform_3(%arg0: i32, %arg1: i32) -> (i32, i32) {
    %c0_i32 = arith.constant 0 : i32
    %c0_i32_0 = arith.constant 0 : i32
    %c0_i32_1 = arith.constant 0 : i32
    return %c0_i32, %c0_i32_0 : i32, i32
  }
  func.func @transform_4(%arg0: i32, %arg1: i32) -> (i32, i32) {
    %c0_i32 = arith.constant 0 : i32
    %c0_i32_0 = arith.constant 0 : i32
    %c0_i32_1 = arith.constant 0 : i32
    return %c0_i32, %c0_i32_0 : i32, i32
  }
  func.func @transform_5(%arg0: i32, %arg1: i32) -> (i32, i32, i32) {
    %c0_i32 = arith.constant 0 : i32
    %c0_i32_0 = arith.constant 0 : i32
    return %arg0, %c0_i32, %arg1 : i32, i32, i32
  }
}

</mosaic_0001>

<llo_original>
// kernel: mlp_forward.1
$region0: #{mlp_forward.1}
  #allocation0 [shape = 'u32[]', space=smem, size = 0x4, offset = 0x4, fixed_abs, tag = 'smem constant byte address 0x4 - core index']
  #allocation1 [shape = 'u32[144,128]{1,0:T(1,128)}', space=vmem, size = 0x12000, scoped, tag = 'internal scratch']
  %s0 = inlined_call_operand.vmem [shape: f32[2,4,256], index: 0, kind: input, shape index: {}]
  %s1 = inlined_call_operand.vmem [shape: f32[32,4], index: 1, kind: input, shape index: {}]
  %s2 = inlined_call_operand.vmem [shape: f32[32,1], index: 2, kind: input, shape index: {}]
  %s3 = inlined_call_operand.vmem [shape: f32[8,32], index: 3, kind: input, shape index: {}]
  %s4 = inlined_call_operand.vmem [shape: f32[8,1], index: 4, kind: input, shape index: {}]
  %s5 = inlined_call_operand.vmem [shape: f32[2,8,256], index: 5, kind: output, shape index: {}]
  %s6 = sld [smem:[#allocation0]]
  $region53: #{mlp_forward.1} parent=0
    _
  %s8 = ssub.s32 1, %s6
  %s9 = scalar_select 0, %s8, %s6
  loop: start=0, step=1, limit=4
  $region2: #{mlp_forward.1} parent=0 // loop_pre_header
    _
  $region3: #{mlp_forward.1} parent=0 // loop_header
    %s11 = sphi 0, %s15
    %p12 = scmp.ge.s32.totalorder %s11, 4
    %s18 = sphi 0, %s30
    %s19 = sphi 0, %s26
    %s20 = sphi 0, %s18
    %s21 = sphi 0, %s19
    %s22 = sphi 0, %s20
    %s23 = sphi 0, %s21
    %s35 = sphi 0, %s37
    %s38 = sphi 0, %s35
    %s39 = sphi 0, %s38
    %s55 = sphi 0, %s39
    %s59 = sphi 0, %s59
    %s61 = sphi 0, %s59
    %s62 = sphi 0, %s61
    %s76 = sphi 0, %s62
    %s80 = sphi 0, %s80
    %s82 = sphi 0, %s80
    %s83 = sphi 0, %s82
    %s97 = sphi 0, %s83
    %s101 = sphi 0, %s101
    %s103 = sphi 0, %s101
    %s104 = sphi 0, %s103
    %s118 = sphi 0, %s104
    %s122 = sphi 0, %s122
    %s124 = sphi 0, %s122
    %s125 = sphi 0, %s124
    %s139 = sphi 0, %s125
    %s147 = sphi 0, %s149
    %s150 = sphi 0, %s147
    %s151 = sphi 0, %s150
    %s167 = sphi 0, %s151
  $region4: #{mlp_forward.1} parent=0 // loop_header_branch
    %14 = sbr.rel (%p12) target = $region8
  $region5: #{mlp_forward.1} parent=0 // loop_body
    %s16 = ssub.s32 %s11, 1
    %s17 = ssub.s32 %s11, 2
    %s24 = sadd.s32 1, %s19
    %p25 = scmp.ge.s32.totalorder %s24, 1
    %s26 = scalar_select %p25, 0, %s24
    %s27 = sadd.s32 1, %s18
    %s28 = scalar_select %p25, %s27, %s18
    %p29 = scmp.ge.s32.totalorder %s28, 2
    %s30 = scalar_select %p29, 0, %s28
    %s31 = ssub.s32 %s18, %s30
    %s32 = ssub.s32 %s19, %s26
    %s33 = sor.u32 %s31, %s32
    %p34 = scmp.eq.s32.totalorder %s33, 0
    %s36 = sadd.s32 %s35, 1
    %s37 = scalar_select %p34, %s35, %s36
    %p40 = pneg %p34
    %p41 = scmp.eq.s32.totalorder %s11, 1
    %p42 = por %p40, %p41
    %p43 = scmp.ne.s32.totalorder %s35, %s38
    %p44 = scmp.eq.s32.totalorder %s11, 0
    %p45 = por %p43, %p44
    %p46 = scmp.ne.s32.totalorder %s35, %s38
    %p47 = scmp.eq.s32.totalorder %s16, 1
    %p48 = por %p46, %p47
    %p49 = scmp.ne.s32.totalorder %s38, %s39
    %p50 = scmp.eq.s32.totalorder %s16, 0
    %p51 = por %p49, %p50
    %p52 = scmp.ne.s32.totalorder %s38, %s39
    %p53 = scmp.eq.s32.totalorder %s17, 1
    %p54 = por %p52, %p53
    %p56 = scmp.ne.s32.totalorder %s39, %s55
    %p57 = scmp.eq.s32.totalorder %s17, 0
    %p58 = por %p56, %p57
    %s60 = sadd.s32 %s59, 1
    %p63 = scmp.eq.s32.totalorder %s11, 1
    %p64 = scmp.ne.s32.totalorder %s59, %s61
    %p65 = scmp.eq.s32.totalorder %s11, 0
    %p66 = por %p64, %p65
    %p67 = scmp.ne.s32.totalorder %s59, %s61
    %p68 = scmp.eq.s32.totalorder %s16, 1
    %p69 = por %p67, %p68
    %p70 = scmp.ne.s32.totalorder %s61, %s62
    %p71 = scmp.eq.s32.totalorder %s16, 0
    %p72 = por %p70, %p71
    %p73 = scmp.ne.s32.totalorder %s61, %s62
    %p74 = scmp.eq.s32.totalorder %s17, 1
    %p75 = por %p73, %p74
    %p77 = scmp.ne.s32.totalorder %s62, %s76
    %p78 = scmp.eq.s32.totalorder %s17, 0
    %p79 = por %p77, %p78
    %s81 = sadd.s32 %s80, 1
    %p84 = scmp.eq.s32.totalorder %s11, 1
    %p85 = scmp.ne.s32.totalorder %s80, %s82
    %p86 = scmp.eq.s32.totalorder %s11, 0
    %p87 = por %p85, %p86
    %p88 = scmp.ne.s32.totalorder %s80, %s82
    %p89 = scmp.eq.s32.totalorder %s16, 1
    %p90 = por %p88, %p89
    %p91 = scmp.ne.s32.totalorder %s82, %s83
    %p92 = scmp.eq.s32.totalorder %s16, 0
    %p93 = por %p91, %p92
    %p94 = scmp.ne.s32.totalorder %s82, %s83
    %p95 = scmp.eq.s32.totalorder %s17, 1
    %p96 = por %p94, %p95
    %p98 = scmp.ne.s32.totalorder %s83, %s97
    %p99 = scmp.eq.s32.totalorder %s17, 0
    %p100 = por %p98, %p99
    %s102 = sadd.s32 %s101, 1
    %p105 = scmp.eq.s32.totalorder %s11, 1
    %p106 = scmp.ne.s32.totalorder %s101, %s103
    %p107 = scmp.eq.s32.totalorder %s11, 0
    %p108 = por %p106, %p107
    %p109 = scmp.ne.s32.totalorder %s101, %s103
    %p110 = scmp.eq.s32.totalorder %s16, 1
    %p111 = por %p109, %p110
    %p112 = scmp.ne.s32.totalorder %s103, %s104
    %p113 = scmp.eq.s32.totalorder %s16, 0
    %p114 = por %p112, %p113
    %p115 = scmp.ne.s32.totalorder %s103, %s104
    %p116 = scmp.eq.s32.totalorder %s17, 1
    %p117 = por %p115, %p116
    %p119 = scmp.ne.s32.totalorder %s104, %s118
    %p120 = scmp.eq.s32.totalorder %s17, 0
    %p121 = por %p119, %p120
    %s123 = sadd.s32 %s122, 1
    %p126 = scmp.eq.s32.totalorder %s11, 1
    %p127 = scmp.ne.s32.totalorder %s122, %s124
    %p128 = scmp.eq.s32.totalorder %s11, 0
    %p129 = por %p127, %p128
    %p130 = scmp.ne.s32.totalorder %s122, %s124
    %p131 = scmp.eq.s32.totalorder %s16, 1
    %p132 = por %p130, %p131
    %p133 = scmp.ne.s32.totalorder %s124, %s125
    %p134 = scmp.eq.s32.totalorder %s16, 0
    %p135 = por %p133, %p134
    %p136 = scmp.ne.s32.totalorder %s124, %s125
    %p137 = scmp.eq.s32.totalorder %s17, 1
    %p138 = por %p136, %p137
    %p140 = scmp.ne.s32.totalorder %s125, %s139
    %p141 = scmp.eq.s32.totalorder %s17, 0
    %p142 = por %p140, %p141
    %s143 = ssub.s32 %s18, %s30
    %s144 = ssub.s32 %s19, %s26
    %s145 = sor.u32 %s143, %s144
    %p146 = scmp.eq.s32.totalorder %s145, 0
    %s148 = sadd.s32 %s147, 1
    %s149 = scalar_select %p146, %s147, %s148
    %p152 = pneg %p146
    %p153 = scmp.eq.s32.totalorder %s11, 1
    %p154 = por %p152, %p153
    %p155 = scmp.ne.s32.totalorder %s147, %s150
    %p156 = scmp.eq.s32.totalorder %s11, 0
    %p157 = por %p155, %p156
    %p158 = scmp.ne.s32.totalorder %s147, %s150
    %p159 = scmp.eq.s32.totalorder %s16, 1
    %p160 = por %p158, %p159
    %p161 = scmp.ne.s32.totalorder %s150, %s151
    %p162 = scmp.eq.s32.totalorder %s16, 0
    %p163 = por %p161, %p162
    %p164 = scmp.ne.s32.totalorder %s150, %s151
    %p165 = scmp.eq.s32.totalorder %s17, 1
    %p166 = por %p164, %p165
    %p168 = scmp.ne.s32.totalorder %s151, %s167
    %p169 = scmp.eq.s32.totalorder %s17, 0
    %p170 = por %p168, %p169
    %p171 = scmp.le.s32.totalorder 1, %s11
    %p172 = scmp.lt.s32.totalorder %s11, 3
    %p173 = pnand %p171, %p172
    %p174 = pneg %p173
    // Predicated region
    $region9: #{mlp_forward.1} parent=5 // pred_check
      _
    $region10: #{mlp_forward.1} parent=5 // pred_check_branch
      %176 = sbr.rel (%p173) target = $region12
    $region11: #{mlp_forward.1} parent=5 // pred_region
      %s177 = ssub.s32 %s11, 1
      // Predicated region
      $region13: #{mlp_forward.1} parent=11 // pred_check
        %p178 = pneg %p72
      $region14: #{mlp_forward.1} parent=11 // pred_check_branch
        %180 = sbr.rel (%p178) target = $region16
      $region15: #{mlp_forward.1} parent=11 // pred_region
        _
      $region16: #{mlp_forward.1} parent=11 // pred_fallthru
        _
      // Predicated region
      $region17: #{mlp_forward.1} parent=11 // pred_check
        %p181 = pneg %p93
      $region18: #{mlp_forward.1} parent=11 // pred_check_branch
        %183 = sbr.rel (%p181) target = $region20
      $region19: #{mlp_forward.1} parent=11 // pred_region
        _
      $region20: #{mlp_forward.1} parent=11 // pred_fallthru
        _
      // Predicated region
      $region21: #{mlp_forward.1} parent=11 // pred_check
        %p184 = pneg %p114
      $region22: #{mlp_forward.1} parent=11 // pred_check_branch
        %186 = sbr.rel (%p184) target = $region24
      $region23: #{mlp_forward.1} parent=11 // pred_region
        _
      $region24: #{mlp_forward.1} parent=11 // pred_fallthru
        _
      // Predicated region
      $region25: #{mlp_forward.1} parent=11 // pred_check
        %p187 = pneg %p135
      $region26: #{mlp_forward.1} parent=11 // pred_check_branch
        %189 = sbr.rel (%p187) target = $region28
      $region27: #{mlp_forward.1} parent=11 // pred_region
        _
      $region28: #{mlp_forward.1} parent=11 // pred_fallthru
        _
    $region12: #{mlp_forward.1} parent=5 // pred_fallthru
      _
    %p190 = scmp.lt.s32.totalorder %s11, 2
    // Predicated region
    $region29: #{mlp_forward.1} parent=5 // pred_check
      %p191 = pneg %p190
    $region30: #{mlp_forward.1} parent=5 // pred_check_branch
      %193 = sbr.rel (%p191) target = $region32
    $region31: #{mlp_forward.1} parent=5 // pred_region
      // Predicated region
      $region33: #{mlp_forward.1} parent=31 // pred_check
        %p194 = pneg %p45
      $region34: #{mlp_forward.1} parent=31 // pred_check_branch
        %196 = sbr.rel (%p194) target = $region36
      $region35: #{mlp_forward.1} parent=31 // pred_region
        %s197 = smul.u32 2, %s19
        %p198 = scmp.lt.s32.totalorder %s18, 1
        %s199 = scalar_select %p198, %s18, 1
        %p200 = scmp.lt.s32.totalorder %s197, 1
        %s201 = scalar_select %p200, %s197, 1
        %s202 = smul.addr %s199, 2
        %s203 = sadd.s32 %s201, %s202
        %s204 = smul.addr %s203, 4
        %s205 = scalar_lea.vmem %s0, %s204
        %s206 = smul.u32 2, %s19
      $region36: #{mlp_forward.1} parent=31 // pred_fallthru
        _
    $region32: #{mlp_forward.1} parent=5 // pred_fallthru
      _
    %p207 = scmp.le.s32.totalorder 1, %s11
    %p208 = scmp.lt.s32.totalorder %s11, 3
    %p209 = pnand %p207, %p208
    %p210 = pneg %p209
    // Predicated region
    $region37: #{mlp_forward.1} parent=5 // pred_check
      _
    $region38: #{mlp_forward.1} parent=5 // pred_check_branch
      %212 = sbr.rel (%p209) target = $region40
    $region39: #{mlp_forward.1} parent=5 // pred_region
      %s213 = ssub.s32 %s11, 1
      %s214 = smul.u32 2, %s21
      %p215 = scmp.lt.s32.totalorder %s20, 1
      %s216 = scalar_select %p215, %s20, 1
      %p217 = scmp.lt.s32.totalorder %s214, 1
      %s218 = scalar_select %p217, %s214, 1
      %s219 = smul.addr %s216, 2
      %s220 = sadd.s32 %s218, %s219
      %s221 = smul.addr %s220, 4
      %s222 = scalar_lea.vmem %s0, %s221
      %p223 = pneg %p51
      %p224 = pneg %p48
      %p225 = pneg %p72
      %p226 = pneg %p69
      %p227 = pneg %p93
      %p228 = pneg %p90
      %p229 = pneg %p114
      %p230 = pneg %p111
      %p231 = pneg %p135
      %p232 = pneg %p132
      %p233 = pneg %p163
      %p234 = pneg %p160
      %s235 = smul.u32 2, %s21
      %p236 = scmp.lt.s32.totalorder %s20, 1
      %s237 = scalar_select %p236, %s20, 1
      %p238 = scmp.lt.s32.totalorder %s235, 1
      %s239 = scalar_select %p238, %s235, 1
      %s240 = smul.addr %s237, 2
      %s241 = sadd.s32 %s239, %s240
      %s242 = smul.addr %s241, 8
      %s243 = scalar_lea.vmem %s5, %s242
      %s244 = smul.u32 2, %s21
      %p245 = scmp.lt.s32.totalorder %s20, 1
      %s246 = scalar_select %p245, %s20, 1
      %p247 = scmp.lt.s32.totalorder %s244, 1
      %s248 = scalar_select %p247, %s244, 1
      %s249 = smul.addr %s246, 2
      %s250 = sadd.s32 %s248, %s249
      %s251 = smul.addr %s250, 4
      %s252 = scalar_lea.vmem %s0, %s251
      %s253 = smul.u32 2, %s21
      %s254 = smul.u32 2, %s21
      %p255 = scmp.lt.s32.totalorder %s20, 1
      %s256 = scalar_select %p255, %s20, 1
      %p257 = scmp.lt.s32.totalorder %s254, 1
      %s258 = scalar_select %p257, %s254, 1
      %s259 = smul.addr %s256, 2
      %s260 = sadd.s32 %s258, %s259
      %s261 = smul.addr %s260, 8
      %s262 = scalar_lea.vmem %s5, %s261
      %s263 = smul.u32 2, %s21
      %v264 = vld [vmem:[%s1] sm:$0xff]
      %v265 = vld [vmem:[%s1 + $0x8] sm:$0xff]
      %v266 = vld [vmem:[%s1 + $0x10] sm:$0xff]
      %v267 = vld [vmem:[%s1 + $0x18] sm:$0xff]
      %v268 = vld [vmem:[%s2] sm:$0xff]
      %v269 = vld [vmem:[%s2 + $0x8] sm:$0xff]
      %v270 = vld [vmem:[%s2 + $0x10] sm:$0xff]
      %v271 = vld [vmem:[%s2 + $0x18] sm:$0xff]
      %v272 = vld [vmem:[%s3] sm:$0xff]
      %v273 = vld [vmem:[%s4] sm:$0xff]
      %v274 = vld [vmem:[%s252] sm:$0xff]
      %276 = vset.pattern.permute.xlu0 0
      %277 = vperm.xlu0 %276, %v268
      %v278 = vpop.permute.xlu0 %277
      %281 = vset.pattern.permute.xlu0 0
      %282 = vperm.xlu0 %281, %v269
      %v283 = vpop.permute.xlu0 %282
      %286 = vset.pattern.permute.xlu0 0
      %287 = vperm.xlu0 %286, %v270
      %v288 = vpop.permute.xlu0 %287
      %291 = vset.pattern.permute.xlu0 0
      %292 = vperm.xlu0 %291, %v271
      %v293 = vpop.permute.xlu0 %292
      %v296 = vcombine.high %v274, %v274
      %vm297 = vcmask 31744
      %v299 = vsel %vm297, %v264, 0
      %v302 = vsel %vm297, %v265, 0
      %v305 = vsel %vm297, %v266, 0
      %v308 = vsel %vm297, %v267, 0
      %vm310 = vcmask 1043456
      %v311 = vsel %vm310, %v274, 0
      %v313 = vsel %vm310, %v296, 0
      %315 = vmatprep.subr.mxu0 %v313
      %316 = vmatpush1.msra.mxu0 %v311
      %317 = vmatprep.subr.mxu0 0.0
      %318 = vmatpush1.msra.mxu0 0.0
      %319 = vmatprep.subr.mxu0 0.0
      %320 = vmatpush1.msra.mxu0 0.0
      %321 = vmatprep.subr.mxu0 0.0
      %322 = vmatpush1.msra.mxu0 0.0
      %323 = vmatprep.subr.mxu0 0.0
      %324 = vmatpush1.msra.mxu0 0.0
      %325 = vmatprep.subr.mxu0 0.0
      %326 = vmatpush1.msra.mxu0 0.0
      %327 = vmatprep.subr.mxu0 0.0
      %328 = vmatpush1.msra.mxu0 0.0
      %329 = vmatprep.subr.mxu0 0.0
      %330 = vmatpush1.msra.mxu0 0.0
      %331 = vmatprep.subr.mxu0 0.0
      %332 = vmatpush1.msra.mxu0 0.0
      %333 = vmatprep.subr.mxu0 0.0
      %334 = vmatpush1.msra.mxu0 0.0
      %335 = vmatprep.subr.mxu0 0.0
      %336 = vmatpush1.msra.mxu0 0.0
      %337 = vmatprep.subr.mxu0 0.0
      %338 = vmatpush1.msra.mxu0 0.0
      %339 = vmatprep.subr.mxu0 0.0
      %340 = vmatpush1.msra.mxu0 0.0
      %341 = vmatprep.subr.mxu0 0.0
      %342 = vmatpush1.msra.mxu0 0.0
      %343 = vmatprep.subr.mxu0 0.0
      %344 = vmatpush1.msra.mxu0 0.0
      %345 = vmatprep.subr.mxu0 0.0
      %346 = vmatpush1.msra.mxu0 0.0
      %347 = vmatprep.subr.mxu0 0.0
      %348 = vmatpush1.msra.mxu0 0.0
      %349 = vmatprep.subr.mxu0 0.0
      %350 = vmatpush1.msra.mxu0 0.0
      %351 = vmatprep.subr.mxu0 0.0
      %352 = vmatpush1.msra.mxu0 0.0
      %353 = vmatprep.subr.mxu0 0.0
      %354 = vmatpush1.msra.mxu0 0.0
      %355 = vmatprep.subr.mxu0 0.0
      %356 = vmatpush1.msra.mxu0 0.0
      %357 = vmatprep.subr.mxu0 0.0
      %358 = vmatpush1.msra.mxu0 0.0
      %359 = vmatprep.subr.mxu0 0.0
      %360 = vmatpush1.msra.mxu0 0.0
      %361 = vmatprep.subr.mxu0 0.0
      %362 = vmatpush1.msra.mxu0 0.0
      %363 = vmatprep.subr.mxu0 0.0
      %364 = vmatpush1.msra.mxu0 0.0
      %365 = vmatprep.subr.mxu0 0.0
      %366 = vmatpush1.msra.mxu0 0.0
      %367 = vmatprep.subr.mxu0 0.0
      %368 = vmatpush1.msra.mxu0 0.0
      %369 = vmatprep.subr.mxu0 0.0
      %370 = vmatpush1.msra.mxu0 0.0
      %371 = vmatprep.subr.mxu0 0.0
      %372 = vmatpush1.msra.mxu0 0.0
      %373 = vmatprep.subr.mxu0 0.0
      %374 = vmatpush1.msra.mxu0 0.0
      %375 = vmatprep.subr.mxu0 0.0
      %376 = vmatpush1.msra.mxu0 0.0
      %377 = vmatprep.subr.mxu0 0.0
      %378 = vmatpush1.msra.mxu0 0.0
      %379 = vmatprep.mubr.f32.mxu0 0.0
      %380 = vmatmul.mubr.f32.gmra.mrb[0].mxu0 %v299
      %v381 = vpop.f32.mrb[0].mxu0
      %v382 = vadd.f32 %v278, %v381
      %v383 = vpop.f32.mrb[0].mxu0
      %v384 = vadd.f32 %v278, %v383
      %385 = vmatprep.mubr.f32.mxu0 0.0
      %386 = vmatmul.mubr.f32.gmra.mrb[0].mxu0 %v302
      %v387 = vpop.f32.mrb[0].mxu0
      %v388 = vadd.f32 %v283, %v387
      %v389 = vpop.f32.mrb[0].mxu0
      %v390 = vadd.f32 %v283, %v389
      %391 = vmatprep.mubr.f32.mxu0 0.0
      %392 = vmatmul.mubr.f32.gmra.mrb[0].mxu0 %v305
      %v393 = vpop.f32.mrb[0].mxu0
      %v394 = vadd.f32 %v288, %v393
      %v395 = vpop.f32.mrb[0].mxu0
      %v396 = vadd.f32 %v288, %v395
      %397 = vmatprep.mubr.f32.mxu0 0.0
      %398 = vmatmul.mubr.f32.gmra.mrb[0].mxu0 %v308
      %v399 = vpop.f32.mrb[0].mxu0
      %v400 = vadd.f32 %v293, %v399
      %v401 = vpop.f32.mrb[0].mxu0
      %v402 = vadd.f32 %v293, %v401
      %403 = vdwg.mxu0
      %v404 = vmul.f32 %v382, 0.5
      %v405 = vmul.f32 %v384, 0.5
      %v406 = vmul.f32 %v388, 0.5
      %v407 = vmul.f32 %v390, 0.5
      %v408 = vmul.f32 %v394, 0.5
      %v409 = vmul.f32 %v396, 0.5
      %v410 = vmul.f32 %v400, 0.5
      %v411 = vmul.f32 %v402, 0.5
      %v412 = vmul.f32 %v382, 0.70710677
      %v413 = vmul.f32 %v384, 0.70710677
      %v414 = vmul.f32 %v388, 0.70710677
      %v415 = vmul.f32 %v390, 0.70710677
      %v416 = vmul.f32 %v394, 0.70710677
      %v417 = vmul.f32 %v396, 0.70710677
      %v418 = vmul.f32 %v400, 0.70710677
      %v419 = vmul.f32 %v402, 0.70710677
      %v420 = verf.f32.pop %v412
      %v421 = verf.f32.pop %v413
      %v422 = verf.f32.pop %v414
      %v423 = verf.f32.pop %v415
      %v424 = verf.f32.pop %v416
      %v425 = verf.f32.pop %v417
      %v426 = verf.f32.pop %v418
      %v427 = verf.f32.pop %v419
      %v428 = vadd.f32 %v420, 1.0
      %v429 = vadd.f32 %v421, 1.0
      %v430 = vadd.f32 %v422, 1.0
      %v431 = vadd.f32 %v423, 1.0
      %v432 = vadd.f32 %v424, 1.0
      %v433 = vadd.f32 %v425, 1.0
      %v434 = vadd.f32 %v426, 1.0
      %v435 = vadd.f32 %v427, 1.0
      %v436 = vmul.f32 %v404, %v428
      %v437 = vmul.f32 %v405, %v429
      %v438 = vmul.f32 %v406, %v430
      %v439 = vmul.f32 %v407, %v431
      %v440 = vmul.f32 %v408, %v432
      %v441 = vmul.f32 %v409, %v433
      %v442 = vmul.f32 %v410, %v434
      %v443 = vmul.f32 %v411, %v435
      %445 = vset.pattern.permute.xlu0 0
      %446 = vperm.xlu0 %445, %v273
      %v447 = vpop.permute.xlu0 %446
      %vm449 = vcmask 261120
      %v451 = vsel %vm449, %v272, 0
      %453 = vmatprep.subr.mxu0 %v437
      %454 = vmatpush1.msra.mxu0 %v436
      %455 = vmatprep.subr.mxu0 %v439
      %456 = vmatpush1.msra.mxu0 %v438
      %457 = vmatprep.subr.mxu0 %v441
      %458 = vmatpush1.msra.mxu0 %v440
      %459 = vmatprep.subr.mxu0 %v443
      %460 = vmatpush1.msra.mxu0 %v442
      %461 = vmatprep.subr.mxu0 0.0
      %462 = vmatpush1.msra.mxu0 0.0
      %463 = vmatprep.subr.mxu0 0.0
      %464 = vmatpush1.msra.mxu0 0.0
      %465 = vmatprep.subr.mxu0 0.0
      %466 = vmatpush1.msra.mxu0 0.0
      %467 = vmatprep.subr.mxu0 0.0
      %468 = vmatpush1.msra.mxu0 0.0
      %469 = vmatprep.subr.mxu0 0.0
      %470 = vmatpush1.msra.mxu0 0.0
      %471 = vmatprep.subr.mxu0 0.0
      %472 = vmatpush1.msra.mxu0 0.0
      %473 = vmatprep.subr.mxu0 0.0
      %474 = vmatpush1.msra.mxu0 0.0
      %475 = vmatprep.subr.mxu0 0.0
      %476 = vmatpush1.msra.mxu0 0.0
      %477 = vmatprep.subr.mxu0 0.0
      %478 = vmatpush1.msra.mxu0 0.0
      %479 = vmatprep.subr.mxu0 0.0
      %480 = vmatpush1.msra.mxu0 0.0
      %481 = vmatprep.subr.mxu0 0.0
      %482 = vmatpush1.msra.mxu0 0.0
      %483 = vmatprep.subr.mxu0 0.0
      %484 = vmatpush1.msra.mxu0 0.0
      %485 = vmatprep.subr.mxu0 0.0
      %486 = vmatpush1.msra.mxu0 0.0
      %487 = vmatprep.subr.mxu0 0.0
      %488 = vmatpush1.msra.mxu0 0.0
      %489 = vmatprep.subr.mxu0 0.0
      %490 = vmatpush1.msra.mxu0 0.0
      %491 = vmatprep.subr.mxu0 0.0
      %492 = vmatpush1.msra.mxu0 0.0
      %493 = vmatprep.subr.mxu0 0.0
      %494 = vmatpush1.msra.mxu0 0.0
      %495 = vmatprep.subr.mxu0 0.0
      %496 = vmatpush1.msra.mxu0 0.0
      %497 = vmatprep.subr.mxu0 0.0
      %498 = vmatpush1.msra.mxu0 0.0
      %499 = vmatprep.subr.mxu0 0.0
      %500 = vmatpush1.msra.mxu0 0.0
      %501 = vmatprep.subr.mxu0 0.0
      %502 = vmatpush1.msra.mxu0 0.0
      %503 = vmatprep.subr.mxu0 0.0
      %504 = vmatpush1.msra.mxu0 0.0
      %505 = vmatprep.subr.mxu0 0.0
      %506 = vmatpush1.msra.mxu0 0.0
      %507 = vmatprep.subr.mxu0 0.0
      %508 = vmatpush1.msra.mxu0 0.0
      %509 = vmatprep.subr.mxu0 0.0
      %510 = vmatpush1.msra.mxu0 0.0
      %511 = vmatprep.subr.mxu0 0.0
      %512 = vmatpush1.msra.mxu0 0.0
      %513 = vmatprep.subr.mxu0 0.0
      %514 = vmatpush1.msra.mxu0 0.0
      %515 = vmatprep.subr.mxu0 0.0
      %516 = vmatpush1.msra.mxu0 0.0
      %517 = vmatprep.mubr.f32.mxu0 0.0
      %518 = vmatmul.mubr.f32.gmra.mrb[0].mxu0 %v451
      %v519 = vpop.f32.mrb[0].mxu0
      %v520 = vadd.f32 %v447, %v519
      %v521 = vpop.f32.mrb[0].mxu0
      %v522 = vadd.f32 %v447, %v521
      %523 = vdwg.mxu0
      %524 = vst [vmem:[%s262] sm:$0xff] %v520
      %525 = vst [vmem:[%s262 + $0x8] sm:$0xff] %v522
      %s526 = smul.u32 2, %s21
      %p527 = scmp.lt.s32.totalorder %s20, 1
      %s528 = scalar_select %p527, %s20, 1
      %p529 = scmp.lt.s32.totalorder %s526, 1
      %s530 = scalar_select %p529, %s526, 1
      %s531 = smul.addr %s528, 2
      %s532 = sadd.s32 %s530, %s531
      %s533 = smul.addr %s532, 8
      %s534 = scalar_lea.vmem %s5, %s533
      // Predicated region
      $region41: #{mlp_forward.1} parent=39 // pred_check
        %p535 = pneg %p160
      $region42: #{mlp_forward.1} parent=39 // pred_check_branch
        %537 = sbr.rel (%p535) target = $region44
      $region43: #{mlp_forward.1} parent=39 // pred_region
        %s538 = smul.u32 2, %s21
      $region44: #{mlp_forward.1} parent=39 // pred_fallthru
        _
    $region40: #{mlp_forward.1} parent=5 // pred_fallthru
      _
    %p539 = scmp.le.s32.totalorder 2, %s11
    // Predicated region
    $region45: #{mlp_forward.1} parent=5 // pred_check
      %p540 = pneg %p539
    $region46: #{mlp_forward.1} parent=5 // pred_check_branch
      %542 = sbr.rel (%p540) target = $region48
    $region47: #{mlp_forward.1} parent=5 // pred_region
      %s543 = ssub.s32 %s11, 2
      // Predicated region
      $region49: #{mlp_forward.1} parent=47 // pred_check
        %p544 = pneg %p166
      $region50: #{mlp_forward.1} parent=47 // pred_check_branch
        %546 = sbr.rel (%p544) target = $region52
      $region51: #{mlp_forward.1} parent=47 // pred_region
        %s547 = smul.u32 2, %s23
        %p548 = scmp.lt.s32.totalorder %s22, 1
        %s549 = scalar_select %p548, %s22, 1
        %p550 = scmp.lt.s32.totalorder %s547, 1
        %s551 = scalar_select %p550, %s547, 1
        %s552 = smul.addr %s549, 2
        %s553 = sadd.s32 %s551, %s552
        %s554 = smul.addr %s553, 8
        %s555 = scalar_lea.vmem %s5, %s554
      $region52: #{mlp_forward.1} parent=47 // pred_fallthru
        _
    $region48: #{mlp_forward.1} parent=5 // pred_fallthru
      _
  $region6: #{mlp_forward.1} parent=0 // loop_footer
    %s15 = sadd.s32 1, %s11
  $region7: #{mlp_forward.1} parent=0 // loop_footer_branch
    %10 = sbr.rel target = $region3
  $region8: #{mlp_forward.1} parent=0 // loop_exit
    _

</llo_original>
